<compile_context>
chip_gen: v6e
topology: v6e:2x2x1
jax: 0.10.0
libtpu: 0.0.40
codegen_flags: <defaults>
</compile_context>

<pallas_src>
import jax
import jax.numpy as jnp
from jax import lax
from jax.experimental import pallas as pl
from jax.experimental.pallas import tpu as pltpu


_TARGET_TILE_BYTES = 2 * 1024 * 1024   # per input buffer (x2 for double-buffering)
_ROW_TILE_CAP = 128                    # rows per block (sublane-ish axis)
_SPATIAL_CAP_MAX = 32768               # lane-axis elements per block, upper clamp


def _round_up(x: int, m: int) -> int:
    return ((x + m - 1) // m) * m


def _choose_tile(dim: int, unit: int, cap: int, min_tile: int):
    """Pick (tile, padded_dim) for one axis of the (rows, spatial) layout.

    Preference order:
      1. the whole axis as a single block (legal for any size, no padding),
      2. the largest multiple of `unit` that divides `dim` exactly (no padding),
      3. pad `dim` up to a multiple of `cap` (costs an extra HBM copy; only for
         awkward shapes with no decent divisor).
    """
    cap = max(cap, unit)
    if dim <= cap:
        return dim, dim
    best = 0
    if dim % unit == 0:
        t = unit
        while t <= cap:
            if dim % t == 0:
                best = t
            t += unit
    if best >= min_tile:
        return best, dim
    return cap, _round_up(dim, cap)


def _global_sum_pool2d_kernel(x_ref, o_ref, acc_ref):
    """x_ref: (TR, THW) input tile; o_ref: (TR, 1) f32; acc_ref: (TR, 128) f32."""
    k = pl.program_id(1)
    tr = x_ref.shape[0]
    thw = x_ref.shape[1]

    @pl.when(k == 0)
    def _init():
        acc_ref[...] = jnp.zeros_like(acc_ref)

    # Stage 1: fold this tile into the (TR, 128) lane-partial with VPU adds only.
    # All slices are static and 128-lane aligned (vreg-aligned, no relayout).
    n_full = thw // 128
    psum = acc_ref[...]
    for j in range(n_full):
        psum = psum + x_ref[:, j * 128:(j + 1) * 128].astype(jnp.float32)

    # Ragged tail (only happens when the spatial block is the full, non-128
    # multiple extent): fold it into lane 0 of the partial.
    rem = thw - n_full * 128
    if rem:
        tail = jnp.sum(
            x_ref[:, n_full * 128:thw].astype(jnp.float32),
            axis=-1, keepdims=True)
        lane = lax.broadcasted_iota(jnp.int32, (tr, 128), 1)
        psum = psum + jnp.where(lane == 0, tail, jnp.float32(0.0))

    acc_ref[...] = psum

    # Stage 2: single cross-lane (XLU) reduce + single output store, last k only.
    @pl.when(k == pl.num_programs(1) - 1)
    def _finalize():
        o_ref[...] = jnp.sum(acc_ref[...], axis=-1, keepdims=True)


@jax.jit
def global_sum_pool2d(x: jax.Array) -> jax.Array:
    """Global sum pooling over 2D feature maps. x: (N, C, H, W) -> (N, C)."""
    N, C, H, W = x.shape
    R = N * C
    HW = H * W
    itemsize = jnp.dtype(x.dtype).itemsize

    # Row (N*C) tile: multiple of 8, <= 128, or the full axis.
    TR, R_pad = _choose_tile(R, unit=8, cap=_ROW_TILE_CAP, min_tile=8)

    # Spatial (H*W) tile: multiple of 128 (or the full axis), sized so the
    # per-buffer tile stays around _TARGET_TILE_BYTES.
    spatial_cap = _TARGET_TILE_BYTES // (itemsize * TR)
    spatial_cap = max(512, min(_SPATIAL_CAP_MAX, spatial_cap))
    spatial_cap = (spatial_cap // 128) * 128
    THW, HW_pad = _choose_tile(HW, unit=128, cap=spatial_cap, min_tile=512)

    # Flatten (free, contiguous) and zero-pad only if no clean tiling exists.
    x2 = x.reshape(R, HW)
    if R_pad != R or HW_pad != HW:
        x2 = jnp.pad(x2, ((0, R_pad - R), (0, HW_pad - HW)))

    grid = (R_pad // TR, HW_pad // THW)

    out = pl.pallas_call(
        _global_sum_pool2d_kernel,
        out_shape=jax.ShapeDtypeStruct((R_pad, 1), jnp.float32),
        grid_spec=pltpu.PrefetchScalarGridSpec(
            num_scalar_prefetch=0,
            grid=grid,
            in_specs=[pl.BlockSpec((TR, THW), lambda i, k: (i, k))],
            out_specs=pl.BlockSpec((TR, 1), lambda i, k: (i, 0)),
            scratch_shapes=[pltpu.VMEM((TR, 128), jnp.float32)],
        ),
        compiler_params=pltpu.CompilerParams(
            dimension_semantics=("parallel", "arbitrary"),
        ),
    )(x2)

    return out[:R, 0].reshape(N, C).astype(x.dtype)


if __name__ == "__main__":
    key = jax.random.PRNGKey(0)
    k1, k2 = jax.random.split(key)

    # Case 1: f32, spatial extent a multiple of 128.
    x1 = jax.random.normal(k1, (2, 4, 16, 16), dtype=jnp.float32)
    out1 = jax.block_until_ready(global_sum_pool2d(x1))
    ref1 = jnp.sum(x1, axis=(2, 3))
    assert out1.shape == (2, 4)
    assert jnp.allclose(out1, ref1, atol=1e-4, rtol=1e-4)

    # Case 2: bf16, ragged spatial extent (28*28 = 784, not a multiple of 128);
    # exercises the in-kernel remainder path and f32 accumulation.
    x2 = jax.random.normal(k2, (2, 6, 28, 28), dtype=jnp.bfloat16)
    out2 = jax.block_until_ready(global_sum_pool2d(x2))
    ref2 = jnp.sum(x2.astype(jnp.float32), axis=(2, 3)).astype(jnp.bfloat16)
    assert out2.shape == (2, 6)
    assert jnp.allclose(out2.astype(jnp.float32), ref2.astype(jnp.float32),
                        atol=5e-1, rtol=2e-2)

    print("KERNEL_OK")
</pallas_src>

<mosaic_0001>
module attributes {stable_mosaic.version = 11 : i64} {
  func.func @_global_sum_pool2d_kernel(%arg0: i32, %arg1: i32, %arg2: memref<8x256xf32, #tpu.memory_space<vmem>>, %arg3: memref<8x1xf32, #tpu.memory_space<vmem>>, %arg4: memref<8x128xf32, #tpu.memory_space<vmem>>) attributes {dimension_semantics = [#tpu.dimension_semantics<parallel>, #tpu.dimension_semantics<arbitrary>], iteration_bounds = array<i64: 1, 1>, scalar_prefetch = 0 : i64, scratch_operands = 1 : i64, tpu.core_type = #tpu.core_type<tc>, window_params = [{transform_indices = @transform_0, window_bounds = array<i64: 8, 256>}, {transform_indices = @transform_1, window_bounds = array<i64: 8, 1>}]} {
    %c0_i32 = arith.constant 0 : i32
    %0 = arith.cmpi eq, %arg1, %c0_i32 : i32
    %1 = arith.extui %0 : i1 to i32
    %c0_i32_0 = arith.constant 0 : i32
    %2 = arith.cmpi ne, %1, %c0_i32_0 : i32
    scf.if %2 {
      %cst = arith.constant 0.000000e+00 : f32
      %12 = vector.broadcast %cst : f32 to vector<8x128xf32>
      %c0_9 = arith.constant 0 : index
      %c0_10 = arith.constant 0 : index
      %13 = vector.load %arg4[%c0_9, %c0_10] : memref<8x128xf32, #tpu.memory_space<vmem>>, vector<8x128xf32>
      tpu.vector_store %arg4[%c0_9, %c0_10], %12 {strides = array<i32>} : memref<8x128xf32, #tpu.memory_space<vmem>>, vector<8x128xf32>,
    } else {
    }
    %c0 = arith.constant 0 : index
    %c0_1 = arith.constant 0 : index
    %3 = vector.load %arg4[%c0, %c0_1] : memref<8x128xf32, #tpu.memory_space<vmem>>, vector<8x128xf32>
    %c0_2 = arith.constant 0 : index
    %c0_3 = arith.constant 0 : index
    %4 = vector.load %arg2[%c0_2, %c0_3] : memref<8x256xf32, #tpu.memory_space<vmem>>, vector<8x128xf32>
    %5 = arith.addf %3, %4 : vector<8x128xf32>
    %c0_4 = arith.constant 0 : index
    %c128 = arith.constant 128 : index
    %6 = vector.load %arg2[%c0_4, %c128] : memref<8x256xf32, #tpu.memory_space<vmem>>, vector<8x128xf32>
    %7 = arith.addf %5, %6 : vector<8x128xf32>
    %c0_5 = arith.constant 0 : index
    %c0_6 = arith.constant 0 : index
    %8 = vector.load %arg4[%c0_5, %c0_6] : memref<8x128xf32, #tpu.memory_space<vmem>>, vector<8x128xf32>
    tpu.vector_store %arg4[%c0_5, %c0_6], %7 {strides = array<i32>} : memref<8x128xf32, #tpu.memory_space<vmem>>, vector<8x128xf32>,
    %c0_i32_7 = arith.constant 0 : i32
    %9 = arith.cmpi eq, %arg1, %c0_i32_7 : i32
    %10 = arith.extui %9 : i1 to i32
    %c0_i32_8 = arith.constant 0 : i32
    %11 = arith.cmpi ne, %10, %c0_i32_8 : i32
    scf.if %11 {
      %c0_9 = arith.constant 0 : index
      %c0_10 = arith.constant 0 : index
      %12 = vector.load %arg4[%c0_9, %c0_10] : memref<8x128xf32, #tpu.memory_space<vmem>>, vector<8x128xf32>
      %cst = arith.constant dense<0.000000e+00> : vector<8xf32>
      %13 = vector.multi_reduction <add>, %12, %cst [1] : vector<8x128xf32> to vector<8xf32>
      %14 = vector.shape_cast %13 : vector<8xf32> to vector<8x1xf32>
      %c0_11 = arith.constant 0 : index
      %c0_12 = arith.constant 0 : index
      %15 = vector.load %arg3[%c0_11, %c0_12] : memref<8x1xf32, #tpu.memory_space<vmem>>, vector<8x1xf32>
      tpu.vector_store %arg3[%c0_11, %c0_12], %14 {strides = array<i32>} : memref<8x1xf32, #tpu.memory_space<vmem>>, vector<8x1xf32>,
    } else {
    }
    return
  }
  func.func @transform_0(%arg0: i32, %arg1: i32) -> (i32, i32) {
    %c0_i32 = arith.constant 0 : i32
    return %arg0, %arg1 : i32, i32
  }
  func.func @transform_1(%arg0: i32, %arg1: i32) -> (i32, i32) {
    %c0_i32 = arith.constant 0 : i32
    %c0_i32_0 = arith.constant 0 : i32
    return %arg0, %c0_i32 : i32, i32
  }
}

</mosaic_0001>

<llo_original>
// kernel: squeeze.1
$region0: #{squeeze.1}
  %s0 = inlined_call_operand.vmem [shape: f32[8], index: 0, kind: input, shape index: {}]
  %s1 = inlined_call_operand.hbm [shape: f32[2,4], index: 1, kind: output, shape index: {}]
  $region1: #{squeeze.1} parent=0
    #allocation0 [shape = 'u8[1024]{0}', space=vmem, size = 0x400, scoped, tag = 'operand span for operand 1']
    #allocation1 [shape = 's32[1]{0}', space=sflag, size = 0x4, scoped, tag = 'scoped memory for squeeze.1']
    #allocation2 [shape = 'u8[4096]{0}', space=vmem, size = 0x1000, scoped, tag = 'scoped mem for output reshape']
    #allocation3 [shape = 'u8[4096]{0}', space=vmem, size = 0x1000, scoped, tag = 'scoped mem for input reshape']
    %2 = vsyncpa [#allocation1], 0
    %s4 = sshll.u32 1, 1
    %s5 = ssub.s32 %s4, 1
    %v6 = vld [vmem:[%s0] sm:%s5]
    %7 = vst [vmem:[#allocation3] sm:%s5] %v6
    %v8 = vld [vmem:[#allocation3] sm:$0x1]
    %vm9 = vcmask 31744
    %10 = vst.msk [vmem:[#allocation2] sm:$0x1] %vm9, %v8
    %v11 = vld [vmem:[#allocation3] sm:$0x1]
    %12 = vrot.lane.b32.xlu0 %v11, 124
    %v13 = vpop.permute.xlu0 %12
    %vm14 = vcmask 31744
    %s15 = scalar_lea.vmem [#allocation2], 1
    %16 = vst.msk [vmem:[%s15] sm:$0x1] %vm14, %v13
    %s18 = sshll.u32 1, 2
    %s19 = ssub.s32 %s18, 1
    %v21 = vld [vmem:[#allocation2] sm:%s19]
    %s22 = sshll.u32 1, 2
    %s23 = ssub.s32 %s22, 1
    %24 = vst [vmem:[#allocation0] sm:%s23] %v21
    %s26 = ssub.s32 32, 32
    %27 = vsyncadd [#allocation1], %s26
    %s29 = sshll.u32 [#allocation0], 4
    %s30 = int_to_ptr.vmem [resolvable:$true] %s29
    %32 = dma.vmem_to_hbm [thread:$0]  %s30, 32, %s1, [#allocation1]
    %33 = dma.done [#allocation1], 32
    %34 = vsyncpa [#allocation1], 1

// kernel: global_sum_pool2d.1
$region0: #{global_sum_pool2d.1}
  #allocation0 [shape = 'u32[]', space=smem, size = 0x4, offset = 0x4, fixed_abs, tag = 'smem constant byte address 0x4 - core index']
  #allocation1 [shape = 'u32[144,128]{1,0:T(1,128)}', space=vmem, size = 0x12000, scoped, tag = 'internal scratch']
  #allocation2 [shape = 'f32[8,128]{1,0:T(8,128)}', space=vmem, size = 0x1000, scoped, tag = 'scratch operand']
  %s0 = inlined_call_operand.vmem [shape: f32[8,256], index: 0, kind: input, shape index: {}]
  %s1 = inlined_call_operand.vmem [shape: f32[8,1], index: 1, kind: output, shape index: {}]
  %s2 = sld [smem:[#allocation0]]
  $region22: #{global_sum_pool2d.1} parent=0
    _
  %s4 = ssub.s32 1, %s2
  %s5 = scalar_select 0, %s4, %s2
  // Predicated region
  $region2: #{global_sum_pool2d.1} parent=0 // pred_check
    _
  $region3: #{global_sum_pool2d.1} parent=0 // pred_check_branch
    %7 = sbr.rel (0) target = $region5
  $region4: #{global_sum_pool2d.1} parent=0 // pred_region
    _
  $region5: #{global_sum_pool2d.1} parent=0 // pred_fallthru
    _
  %p8 = scmp.eq.s32.totalorder 0, 0
  // Predicated region
  $region6: #{global_sum_pool2d.1} parent=0 // pred_check
    %p9 = pneg %p8
  $region7: #{global_sum_pool2d.1} parent=0 // pred_check_branch
    %11 = sbr.rel (%p9) target = $region9
  $region8: #{global_sum_pool2d.1} parent=0 // pred_region
    %12 = vst [vmem:[#allocation2] sm:$0xff] 0.0
  $region9: #{global_sum_pool2d.1} parent=0 // pred_fallthru
    _
  %v13 = vld [vmem:[#allocation2] sm:$0xff]
  %v14 = vld [vmem:[%s0] sm:$0xff]
  %v15 = vadd.f32 %v13, %v14
  %v16 = vld [vmem:[%s0 + $0x8] sm:$0xff]
  %v17 = vadd.f32 %v15, %v16
  %18 = vst [vmem:[#allocation2] sm:$0xff] %v17
  // Predicated region
  $region10: #{global_sum_pool2d.1} parent=0 // pred_check
    %p19 = pneg %p8
  $region11: #{global_sum_pool2d.1} parent=0 // pred_check_branch
    %21 = sbr.rel (%p19) target = $region13
  $region12: #{global_sum_pool2d.1} parent=0 // pred_region
    %v22 = vld [vmem:[#allocation2] sm:$0xff]
    %23 = vadd.xlane.f32.xlu0 %v22
    %v24 = vpop.xlane.xlu0 %23
    %vm25 = vcmask 7168
    %26 = vst.msk [vmem:[%s1] sm:$0xff] %vm25, %v24
  $region13: #{global_sum_pool2d.1} parent=0 // pred_fallthru
    _
  // Predicated region
  $region14: #{global_sum_pool2d.1} parent=0 // pred_check
    _
  $region15: #{global_sum_pool2d.1} parent=0 // pred_check_branch
    %28 = sbr.rel (0) target = $region17
  $region16: #{global_sum_pool2d.1} parent=0 // pred_region
    _
  $region17: #{global_sum_pool2d.1} parent=0 // pred_fallthru
    _
  // Predicated region
  $region18: #{global_sum_pool2d.1} parent=0 // pred_check
    _
  $region19: #{global_sum_pool2d.1} parent=0 // pred_check_branch
    %30 = sbr.rel (0) target = $region21
  $region20: #{global_sum_pool2d.1} parent=0 // pred_region
    _
  $region21: #{global_sum_pool2d.1} parent=0 // pred_fallthru
    _

</llo_original>
